<compile_context>
chip_gen: v7x
topology: tpu7x:2x2x1
jax: 0.10.0
libtpu: 0.0.40
codegen_flags: <defaults>
</compile_context>

<pallas_src>
import functools

import jax
import jax.numpy as jnp
from jax import lax
from jax.experimental import pallas as pl
from jax.experimental.pallas import tpu as pltpu


def _round_up(v, m):
    return ((v + m - 1) // m) * m


def _relu_k_mlp_kernel(xT_ref, w1_ref, b1_ref, w2_ref, oT_ref, *, k, mxu_dtype):
    # xT_ref : (D, TN)   input tile, batch on the lane axis
    # w1_ref : (H, D)    fc1.weight (PyTorch layout), block-resident
    # b1_ref : (H, 1)    fc1.bias
    # w2_ref : (H, 1) if C == 1 else (C, H)   fc2.weight, layout chosen by wrapper
    # oT_ref : (C, TN)   output tile, batch on the lane axis (lane-dense)
    xT = xT_ref[...]
    w1 = w1_ref[...]
    b1 = b1_ref[...]
    d = xT.shape[0]
    c = oT_ref.shape[0]

    if d == 1:
        # D==1 contraction is a pure outer product: one VALU broadcast multiply,
        # no MXU fill/drain latency.
        h = w1 * xT + b1                                    # (H,1)*(1,TN) -> (H,TN)
    else:
        # Canonical (H,D)x(D,TN) MXU form; optional bf16 inputs, f32 accumulate.
        h = jnp.dot(w1.astype(mxu_dtype), xT.astype(mxu_dtype),
                    preferred_element_type=jnp.float32) + b1

    a = jnp.maximum(h, 0.0)
    if k != 1:
        # static integer power -> cheap VALU multiply chain (never exp/log on EUP)
        a = lax.integer_pow(a, k)

    w2 = w2_ref[...]
    if c == 1:
        # A 1-output-lane matmul would waste the MXU; multiply + sublane reduce.
        out = jnp.sum(w2 * a, axis=0, keepdims=True)        # (H,1)*(H,TN) -> (1,TN)
    else:
        # Canonical (C,H)x(H,TN) MXU form (no dim-0 LHS contraction / XLU transpose).
        out = jnp.dot(w2.astype(mxu_dtype), a.astype(mxu_dtype),
                      preferred_element_type=jnp.float32)
    oT_ref[...] = out.astype(oT_ref.dtype)


def relu_k_shallow_net(x, w1, b1, w2, k=1, tile_n=4096, single_block_max=8192,
                       mxu_dtype=jnp.float32):
    """Forward pass of the ReLU^k shallow network.

    x  : (N, input_size)            float32
    w1 : (hidden, input_size)       fc1.weight
    b1 : (hidden,)                  fc1.bias
    w2 : (num_classes, hidden)      fc2.weight  (bias=False)
    k  : static Python int (degree of the ReLU)
    returns (N, num_classes) float32
    """
    assert isinstance(k, int), "k must be a static Python int (traced k would lower to EUP pow)"
    n, d = x.shape
    h = w1.shape[0]
    c = w2.shape[0]

    # ---- generation-aware VMEM budget --------------------------------------
    try:
        vmem_capacity = int(pltpu.get_tpu_info().vmem_capacity_bytes)
    except Exception:                       # fall back to the tightest (v7x) number
        vmem_capacity = 64 << 20
    vmem_budget = (vmem_capacity * 3) // 4  # ~48 MiB on v7x, ~96 MiB on v5e/v6e

    # Per-lane VMEM bytes of one block: double-buffered x/out tiles + h/a intermediates.
    bytes_per_lane = 4 * (2 * (d + c) + 4 * h)
    weight_bytes = 4 * 2 * (h * d + h + h * c)
    max_block_n = max(
        128,
        ((vmem_budget - weight_bytes - (4 << 20)) // bytes_per_lane) // 128 * 128)

    # ---- batch tiling -------------------------------------------------------
    # With H=32 the per-tile work is a handful of (H, TN) vreg ops, so the ~0.35 us
    # per-grid-step overhead dominates: take one wide 128-aligned block whenever the
    # whole batch fits comfortably; only tile for genuinely large N.
    n_pad128 = max(128, _round_up(n, 128))
    if n_pad128 <= min(single_block_max, max_block_n):
        block_n = n_pad128
        grid_n = 1
    else:
        block_n = max(128, min(_round_up(tile_n, 128), max_block_n))
        grid_n = pl.cdiv(n, block_n)
        if grid_n > 1 and grid_n % 2 == 1:
            # v7x megacore: an even "parallel" grid splits cleanly across the 2 TCs.
            cand = max(128, _round_up(pl.cdiv(n, grid_n + 1), 128))
            if cand <= max_block_n and pl.cdiv(n, cand) % 2 == 0:
                block_n = cand
                grid_n = pl.cdiv(n, cand)

    # Host-side zero padding so every block is full: all in-kernel loads/stores are
    # lane-dense unmasked vld/vst, and correctness never relies on ragged-tail
    # padding semantics (invariant flagged in review). Padded columns are sliced off.
    n_arr = block_n * grid_n

    # ---- glue reshapes (kept outside the kernel) ----------------------------
    # D==1 / C==1 transposes are pure reshapes (no HBM copy).
    xT = x.reshape(1, n) if d == 1 else jnp.transpose(x)    # (D, N)
    # TODO(synk): for general D>1 a tile-local transpose (pltpu.einshape) inside the
    # kernel would avoid this extra XLA transpose pass over x.
    if n_arr != n:
        xT = jnp.pad(xT, ((0, 0), (0, n_arr - n)))
    b1_2d = b1.reshape(h, 1)                                 # (H, 1)
    w2_arg = w2.reshape(h, 1) if c == 1 else w2              # (H,1) reduce / (C,H) MXU
    w2_block = (h, 1) if c == 1 else (c, h)

    # VMEM limit: actual requirement + headroom; block_n was bounded by the same
    # budget, so this never clamps below what the kernel needs.
    vmem_needed = bytes_per_lane * block_n + weight_bytes
    vmem_bytes = int(min(max(vmem_needed + (4 << 20), 4 << 20), vmem_budget))

    cost = pl.CostEstimate(
        flops=2 * n * h * (d + c) + (k + 1) * n * h,
        transcendentals=0,
        bytes_accessed=4 * (n * d + h * d + h + h * c + n * c),
    )

    kernel = functools.partial(_relu_k_mlp_kernel, k=k, mxu_dtype=mxu_dtype)

    outT = pl.pallas_call(
        kernel,
        out_shape=jax.ShapeDtypeStruct((c, n_arr), jnp.float32),
        grid=(grid_n,),
        in_specs=[
            pl.BlockSpec((d, block_n), lambda i: (0, i)),    # x tile follows the grid
            pl.BlockSpec((h, d), lambda i: (0, 0)),          # weights block-resident
            pl.BlockSpec((h, 1), lambda i: (0, 0)),
            pl.BlockSpec(w2_block, lambda i: (0, 0)),
        ],
        out_specs=pl.BlockSpec((c, block_n), lambda i: (0, i)),
        compiler_params=pltpu.CompilerParams(
            dimension_semantics=("parallel",),               # independent batch tiles
            vmem_limit_bytes=vmem_bytes),
        cost_estimate=cost,
    )(xT, w1, b1_2d, w2_arg)

    # (C,N) -> (N,C); C==1 transpose is a copy-free reshape.
    out = outT.reshape(n_arr, c) if c == 1 else jnp.transpose(outT)
    return out[:n] if n_arr != n else out


if __name__ == "__main__":
    # Shapes consistent with the 1-D nonlinear-PDE OGA setting:
    # input_size=1, hidden_size1=32, num_classes=1, ReLU^2.
    input_size, hidden_size1, num_classes, k = 1, 32, 1, 2
    batch = 1024

    key = jax.random.PRNGKey(0)
    kx, kw1, kb1, kw2 = jax.random.split(key, 4)

    x = jax.random.normal(kx, (batch, input_size), dtype=jnp.float32)
    bound1 = 1.0 / (input_size ** 0.5)
    bound2 = 1.0 / (hidden_size1 ** 0.5)
    w1 = jax.random.uniform(kw1, (hidden_size1, input_size),
                            minval=-bound1, maxval=bound1, dtype=jnp.float32)
    b1 = jax.random.uniform(kb1, (hidden_size1,),
                            minval=-bound1, maxval=bound1, dtype=jnp.float32)
    w2 = jax.random.uniform(kw2, (num_classes, hidden_size1),
                            minval=-bound2, maxval=bound2, dtype=jnp.float32)

    ref_fn = lambda xx: jnp.maximum(xx @ w1.T + b1, 0.0) ** k @ w2.T

    # Default path: whole batch in one lane-dense block (grid=(1,), no step overhead).
    out = jax.block_until_ready(relu_k_shallow_net(x, w1, b1, w2, k=k))
    assert out.shape == (batch, num_classes)
    assert jnp.allclose(out, ref_fn(x), atol=1e-5, rtol=1e-5)

    # Forced multi-tile path: grid=(2,) (even -> clean 2-way TensorCore split on v7x).
    out_mt = jax.block_until_ready(
        relu_k_shallow_net(x, w1, b1, w2, k=k, tile_n=512, single_block_max=256))
    assert out_mt.shape == (batch, num_classes)
    assert jnp.allclose(out_mt, ref_fn(x), atol=1e-5, rtol=1e-5)

    # Tiny-batch path (typical OGA point count): padded to one full 128-lane block.
    x_small = x[:8]
    out_small = jax.block_until_ready(relu_k_shallow_net(x_small, w1, b1, w2, k=k))
    assert out_small.shape == (8, num_classes)
    assert jnp.allclose(out_small, ref_fn(x_small), atol=1e-5, rtol=1e-5)

    # Ragged N with tiling: host padding keeps every block full / every store unmasked.
    x_rag = x[:1000]
    out_rag = jax.block_until_ready(
        relu_k_shallow_net(x_rag, w1, b1, w2, k=k, tile_n=512, single_block_max=256))
    assert out_rag.shape == (1000, num_classes)
    assert jnp.allclose(out_rag, ref_fn(x_rag), atol=1e-5, rtol=1e-5)

    # TODO(synk): evaluate_derivative (heaviside / k*relu^(k-1) path) is not part of
    # forward(); it is not implemented here.
    print("KERNEL_OK")
</pallas_src>

<mosaic_0001>
module attributes {stable_mosaic.version = 11 : i64} {
  func.func @_relu_k_mlp_kernel(%arg0: i32, %arg1: memref<1x1024xf32, #tpu.memory_space<vmem>>, %arg2: memref<32x1xf32, #tpu.memory_space<vmem>>, %arg3: memref<32x1xf32, #tpu.memory_space<vmem>>, %arg4: memref<32x1xf32, #tpu.memory_space<vmem>>, %arg5: memref<1x1024xf32, #tpu.memory_space<vmem>>) attributes {dimension_semantics = [#tpu.dimension_semantics<parallel>], iteration_bounds = array<i64: 1>, scalar_prefetch = 0 : i64, scratch_operands = 0 : i64, tpu.core_type = #tpu.core_type<tc>, window_params = [{transform_indices = @transform_0, window_bounds = array<i64: 1, 1024>}, {pipeline_mode = #tpu.pipeline_mode<synchronous>, transform_indices = @transform_1, window_bounds = array<i64: 32, 1>}, {pipeline_mode = #tpu.pipeline_mode<synchronous>, transform_indices = @transform_2, window_bounds = array<i64: 32, 1>}, {pipeline_mode = #tpu.pipeline_mode<synchronous>, transform_indices = @transform_3, window_bounds = array<i64: 32, 1>}, {transform_indices = @transform_4, window_bounds = array<i64: 1, 1024>}]} {
    %c0 = arith.constant 0 : index
    %c0_0 = arith.constant 0 : index
    %0 = vector.load %arg1[%c0, %c0_0] : memref<1x1024xf32, #tpu.memory_space<vmem>>, vector<1x1024xf32>
    %c0_1 = arith.constant 0 : index
    %c0_2 = arith.constant 0 : index
    %1 = vector.load %arg2[%c0_1, %c0_2] : memref<32x1xf32, #tpu.memory_space<vmem>>, vector<32x1xf32>
    %c0_3 = arith.constant 0 : index
    %c0_4 = arith.constant 0 : index
    %2 = vector.load %arg3[%c0_3, %c0_4] : memref<32x1xf32, #tpu.memory_space<vmem>>, vector<32x1xf32>
    %3 = vector.broadcast %1 : vector<32x1xf32> to vector<32x1024xf32>
    %4 = vector.broadcast %0 : vector<1x1024xf32> to vector<32x1024xf32>
    %5 = arith.mulf %3, %4 : vector<32x1024xf32>
    %6 = vector.broadcast %2 : vector<32x1xf32> to vector<32x1024xf32>
    %7 = arith.addf %5, %6 : vector<32x1024xf32>
    %cst = arith.constant 0.000000e+00 : f32
    %8 = vector.broadcast %cst : f32 to vector<32x1024xf32>
    %9 = arith.maximumf %7, %8 : vector<32x1024xf32>
    %10 = arith.mulf %9, %9 : vector<32x1024xf32>
    %c0_5 = arith.constant 0 : index
    %c0_6 = arith.constant 0 : index
    %11 = vector.load %arg4[%c0_5, %c0_6] : memref<32x1xf32, #tpu.memory_space<vmem>>, vector<32x1xf32>
    %12 = vector.broadcast %11 : vector<32x1xf32> to vector<32x1024xf32>
    %13 = arith.mulf %12, %10 : vector<32x1024xf32>
    %cst_7 = arith.constant dense<0.000000e+00> : vector<1024xf32>
    %14 = vector.multi_reduction <add>, %13, %cst_7 [0] : vector<32x1024xf32> to vector<1024xf32>
    %15 = vector.shape_cast %14 : vector<1024xf32> to vector<1x1024xf32>
    %c0_8 = arith.constant 0 : index
    %c0_9 = arith.constant 0 : index
    %16 = vector.load %arg5[%c0_8, %c0_9] : memref<1x1024xf32, #tpu.memory_space<vmem>>, vector<1x1024xf32>
    tpu.vector_store %arg5[%c0_8, %c0_9], %15 {strides = array<i32>} : memref<1x1024xf32, #tpu.memory_space<vmem>>, vector<1x1024xf32>,
    return
  }
  func.func @transform_0(%arg0: i32) -> (i32, i32) {
    %c0_i32 = arith.constant 0 : i32
    %c0_i32_0 = arith.constant 0 : i32
    return %c0_i32, %arg0 : i32, i32
  }
  func.func @transform_1(%arg0: i32) -> (i32, i32) {
    %c0_i32 = arith.constant 0 : i32
    %c0_i32_0 = arith.constant 0 : i32
    %c0_i32_1 = arith.constant 0 : i32
    return %c0_i32, %c0_i32_0 : i32, i32
  }
  func.func @transform_2(%arg0: i32) -> (i32, i32) {
    %c0_i32 = arith.constant 0 : i32
    %c0_i32_0 = arith.constant 0 : i32
    %c0_i32_1 = arith.constant 0 : i32
    return %c0_i32, %c0_i32_0 : i32, i32
  }
  func.func @transform_3(%arg0: i32) -> (i32, i32) {
    %c0_i32 = arith.constant 0 : i32
    %c0_i32_0 = arith.constant 0 : i32
    %c0_i32_1 = arith.constant 0 : i32
    return %c0_i32, %c0_i32_0 : i32, i32
  }
  func.func @transform_4(%arg0: i32) -> (i32, i32) {
    %c0_i32 = arith.constant 0 : i32
    %c0_i32_0 = arith.constant 0 : i32
    return %c0_i32, %arg0 : i32, i32
  }
}

</mosaic_0001>

<llo_original>
// kernel: tpu_custom_call.1
$region0: #{tpu_custom_call.1}
  #allocation0 [shape = 'u32[]', space=smem, size = 0x4, offset = 0x4, fixed_abs, tag = 'smem constant byte address 0x4 - core index']
  #allocation1 [shape = 'u32[144,128]{1,0:T(1,128)}', space=vmem, size = 0x12000, scoped, tag = 'internal scratch']
  %s0 = inlined_call_operand.vmem [shape: f32[1,1024], index: 0, kind: input, shape index: {}]
  %s1 = inlined_call_operand.vmem [shape: f32[32,1], index: 1, kind: input, shape index: {}]
  %s2 = inlined_call_operand.vmem [shape: f32[32,1], index: 2, kind: input, shape index: {}]
  %s3 = inlined_call_operand.vmem [shape: f32[32,1], index: 3, kind: input, shape index: {}]
  %s4 = inlined_call_operand.hbm [shape: f32[1,1024], index: 4, kind: output, shape index: {}]
  %s5 = sld [smem:[#allocation0]]
  $region26: #{tpu_custom_call.1} parent=0
    _
  %s7 = ssub.s32 1, %s5
  %s8 = scalar_select 0, %s7, %s5
  $region1: #{tpu_custom_call.1} parent=0
    #allocation2 [shape = 'u8[4096]{0}', space=vmem, size = 0x1000, scoped, tag = 'output window, operand 0, single buffered']
    #allocation3 [shape = 's32[1]{0}', space=sflag, size = 0x4, scoped, tag = 'scoped memory for tpu_custom_call.1']
    %9 = vsyncpa [#allocation3], 0
    // Predicated region
    $region2: #{tpu_custom_call.1} parent=1 // pred_check
      _
    $region3: #{tpu_custom_call.1} parent=1 // pred_check_branch
      %11 = sbr.rel (0) target = $region5
    $region4: #{tpu_custom_call.1} parent=1 // pred_region
      _
    $region5: #{tpu_custom_call.1} parent=1 // pred_fallthru
      _
    // Predicated region
    $region6: #{tpu_custom_call.1} parent=1 // pred_check
      _
    $region7: #{tpu_custom_call.1} parent=1 // pred_check_branch
      %13 = sbr.rel (0) target = $region9
    $region8: #{tpu_custom_call.1} parent=1 // pred_region
      _
    $region9: #{tpu_custom_call.1} parent=1 // pred_fallthru
      _
    // Predicated region
    $region10: #{tpu_custom_call.1} parent=1 // pred_check
      _
    $region11: #{tpu_custom_call.1} parent=1 // pred_check_branch
      %15 = sbr.rel (0) target = $region13
    $region12: #{tpu_custom_call.1} parent=1 // pred_region
      _
    $region13: #{tpu_custom_call.1} parent=1 // pred_fallthru
      _
    // Predicated region
    $region14: #{tpu_custom_call.1} parent=1 // pred_check
      _
    $region15: #{tpu_custom_call.1} parent=1 // pred_check_branch
      %17 = sbr.rel (0) target = $region17
    $region16: #{tpu_custom_call.1} parent=1 // pred_region
      _
    $region17: #{tpu_custom_call.1} parent=1 // pred_fallthru
      _
    %v18 = vld [vmem:[%s0] sm:$0xff]
    %v19 = vld [vmem:[%s1] sm:$0xff]
    %v20 = vld [vmem:[%s1 + $0x8] sm:$0xff]
    %v21 = vld [vmem:[%s1 + $0x10] sm:$0xff]
    %v22 = vld [vmem:[%s1 + $0x18] sm:$0xff]
    %v23 = vld [vmem:[%s2] sm:$0xff]
    %v24 = vld [vmem:[%s2 + $0x8] sm:$0xff]
    %v25 = vld [vmem:[%s2 + $0x10] sm:$0xff]
    %v26 = vld [vmem:[%s2 + $0x18] sm:$0xff]
    %28 = vset.pattern.permute.xlu0 0
    %29 = vperm.xlu0 %28, %v19
    %v30 = vpop.permute.xlu0 %29
    %33 = vset.pattern.permute.xlu0 0
    %34 = vperm.xlu0 %33, %v20
    %v35 = vpop.permute.xlu0 %34
    %38 = vset.pattern.permute.xlu0 0
    %39 = vperm.xlu0 %38, %v21
    %v40 = vpop.permute.xlu0 %39
    %43 = vset.pattern.permute.xlu0 0
    %44 = vperm.xlu0 %43, %v22
    %v45 = vpop.permute.xlu0 %44
    %v48 = vlaneseq
    %v49 = vshrl.u32 %v48, 7
    %v50 = vsub.s32 0, %v49
    %v51 = vrot.slane %v18, %v50
    %v52 = vlaneseq
    %v53 = vshrl.u32 %v52, 7
    %v54 = vsub.s32 1, %v53
    %v55 = vrot.slane %v18, %v54
    %v56 = vlaneseq
    %v57 = vshrl.u32 %v56, 7
    %v58 = vsub.s32 2, %v57
    %v59 = vrot.slane %v18, %v58
    %v60 = vlaneseq
    %v61 = vshrl.u32 %v60, 7
    %v62 = vsub.s32 3, %v61
    %v63 = vrot.slane %v18, %v62
    %v64 = vlaneseq
    %v65 = vshrl.u32 %v64, 7
    %v66 = vsub.s32 4, %v65
    %v67 = vrot.slane %v18, %v66
    %v68 = vlaneseq
    %v69 = vshrl.u32 %v68, 7
    %v70 = vsub.s32 5, %v69
    %v71 = vrot.slane %v18, %v70
    %v72 = vlaneseq
    %v73 = vshrl.u32 %v72, 7
    %v74 = vsub.s32 6, %v73
    %v75 = vrot.slane %v18, %v74
    %v76 = vlaneseq
    %v77 = vshrl.u32 %v76, 7
    %v78 = vsub.s32 7, %v77
    %v79 = vrot.slane %v18, %v78
    %v88 = vmul.f32 %v30, %v51
    %v89 = vmul.f32 %v30, %v55
    %v90 = vmul.f32 %v30, %v59
    %v91 = vmul.f32 %v30, %v63
    %v92 = vmul.f32 %v30, %v67
    %v93 = vmul.f32 %v30, %v71
    %v94 = vmul.f32 %v30, %v75
    %v95 = vmul.f32 %v30, %v79
    %v96 = vmul.f32 %v35, %v51
    %v97 = vmul.f32 %v35, %v55
    %v98 = vmul.f32 %v35, %v59
    %v99 = vmul.f32 %v35, %v63
    %v100 = vmul.f32 %v35, %v67
    %v101 = vmul.f32 %v35, %v71
    %v102 = vmul.f32 %v35, %v75
    %v103 = vmul.f32 %v35, %v79
    %v104 = vmul.f32 %v40, %v51
    %v105 = vmul.f32 %v40, %v55
    %v106 = vmul.f32 %v40, %v59
    %v107 = vmul.f32 %v40, %v63
    %v108 = vmul.f32 %v40, %v67
    %v109 = vmul.f32 %v40, %v71
    %v110 = vmul.f32 %v40, %v75
    %v111 = vmul.f32 %v40, %v79
    %v112 = vmul.f32 %v45, %v51
    %v113 = vmul.f32 %v45, %v55
    %v114 = vmul.f32 %v45, %v59
    %v115 = vmul.f32 %v45, %v63
    %v116 = vmul.f32 %v45, %v67
    %v117 = vmul.f32 %v45, %v71
    %v118 = vmul.f32 %v45, %v75
    %v119 = vmul.f32 %v45, %v79
    %121 = vset.pattern.permute.xlu0 0
    %122 = vperm.xlu0 %121, %v23
    %v123 = vpop.permute.xlu0 %122
    %126 = vset.pattern.permute.xlu0 0
    %127 = vperm.xlu0 %126, %v24
    %v128 = vpop.permute.xlu0 %127
    %131 = vset.pattern.permute.xlu0 0
    %132 = vperm.xlu0 %131, %v25
    %v133 = vpop.permute.xlu0 %132
    %136 = vset.pattern.permute.xlu0 0
    %137 = vperm.xlu0 %136, %v26
    %v138 = vpop.permute.xlu0 %137
    %v140 = vadd.f32 %v88, %v123
    %v141 = vadd.f32 %v89, %v123
    %v142 = vadd.f32 %v90, %v123
    %v143 = vadd.f32 %v91, %v123
    %v144 = vadd.f32 %v92, %v123
    %v145 = vadd.f32 %v93, %v123
    %v146 = vadd.f32 %v94, %v123
    %v147 = vadd.f32 %v95, %v123
    %v148 = vadd.f32 %v96, %v128
    %v149 = vadd.f32 %v97, %v128
    %v150 = vadd.f32 %v98, %v128
    %v151 = vadd.f32 %v99, %v128
    %v152 = vadd.f32 %v100, %v128
    %v153 = vadd.f32 %v101, %v128
    %v154 = vadd.f32 %v102, %v128
    %v155 = vadd.f32 %v103, %v128
    %v156 = vadd.f32 %v104, %v133
    %v157 = vadd.f32 %v105, %v133
    %v158 = vadd.f32 %v106, %v133
    %v159 = vadd.f32 %v107, %v133
    %v160 = vadd.f32 %v108, %v133
    %v161 = vadd.f32 %v109, %v133
    %v162 = vadd.f32 %v110, %v133
    %v163 = vadd.f32 %v111, %v133
    %v164 = vadd.f32 %v112, %v138
    %v165 = vadd.f32 %v113, %v138
    %v166 = vadd.f32 %v114, %v138
    %v167 = vadd.f32 %v115, %v138
    %v168 = vadd.f32 %v116, %v138
    %v169 = vadd.f32 %v117, %v138
    %v170 = vadd.f32 %v118, %v138
    %v171 = vadd.f32 %v119, %v138
    %v172 = vmax.f32 %v140, 0.0
    %v173 = vmax.f32 %v141, 0.0
    %v174 = vmax.f32 %v142, 0.0
    %v175 = vmax.f32 %v143, 0.0
    %v176 = vmax.f32 %v144, 0.0
    %v177 = vmax.f32 %v145, 0.0
    %v178 = vmax.f32 %v146, 0.0
    %v179 = vmax.f32 %v147, 0.0
    %v180 = vmax.f32 %v148, 0.0
    %v181 = vmax.f32 %v149, 0.0
    %v182 = vmax.f32 %v150, 0.0
    %v183 = vmax.f32 %v151, 0.0
    %v184 = vmax.f32 %v152, 0.0
    %v185 = vmax.f32 %v153, 0.0
    %v186 = vmax.f32 %v154, 0.0
    %v187 = vmax.f32 %v155, 0.0
    %v188 = vmax.f32 %v156, 0.0
    %v189 = vmax.f32 %v157, 0.0
    %v190 = vmax.f32 %v158, 0.0
    %v191 = vmax.f32 %v159, 0.0
    %v192 = vmax.f32 %v160, 0.0
    %v193 = vmax.f32 %v161, 0.0
    %v194 = vmax.f32 %v162, 0.0
    %v195 = vmax.f32 %v163, 0.0
    %v196 = vmax.f32 %v164, 0.0
    %v197 = vmax.f32 %v165, 0.0
    %v198 = vmax.f32 %v166, 0.0
    %v199 = vmax.f32 %v167, 0.0
    %v200 = vmax.f32 %v168, 0.0
    %v201 = vmax.f32 %v169, 0.0
    %v202 = vmax.f32 %v170, 0.0
    %v203 = vmax.f32 %v171, 0.0
    %v204 = vmul.f32 %v172, %v172
    %v205 = vmul.f32 %v173, %v173
    %v206 = vmul.f32 %v174, %v174
    %v207 = vmul.f32 %v175, %v175
    %v208 = vmul.f32 %v176, %v176
    %v209 = vmul.f32 %v177, %v177
    %v210 = vmul.f32 %v178, %v178
    %v211 = vmul.f32 %v179, %v179
    %v212 = vmul.f32 %v180, %v180
    %v213 = vmul.f32 %v181, %v181
    %v214 = vmul.f32 %v182, %v182
    %v215 = vmul.f32 %v183, %v183
    %v216 = vmul.f32 %v184, %v184
    %v217 = vmul.f32 %v185, %v185
    %v218 = vmul.f32 %v186, %v186
    %v219 = vmul.f32 %v187, %v187
    %v220 = vmul.f32 %v188, %v188
    %v221 = vmul.f32 %v189, %v189
    %v222 = vmul.f32 %v190, %v190
    %v223 = vmul.f32 %v191, %v191
    %v224 = vmul.f32 %v192, %v192
    %v225 = vmul.f32 %v193, %v193
    %v226 = vmul.f32 %v194, %v194
    %v227 = vmul.f32 %v195, %v195
    %v228 = vmul.f32 %v196, %v196
    %v229 = vmul.f32 %v197, %v197
    %v230 = vmul.f32 %v198, %v198
    %v231 = vmul.f32 %v199, %v199
    %v232 = vmul.f32 %v200, %v200
    %v233 = vmul.f32 %v201, %v201
    %v234 = vmul.f32 %v202, %v202
    %v235 = vmul.f32 %v203, %v203
    %v236 = vld [vmem:[%s3] sm:$0xff]
    %v237 = vld [vmem:[%s3 + $0x8] sm:$0xff]
    %v238 = vld [vmem:[%s3 + $0x10] sm:$0xff]
    %v239 = vld [vmem:[%s3 + $0x18] sm:$0xff]
    %241 = vset.pattern.permute.xlu0 0
    %242 = vperm.xlu0 %241, %v236
    %v243 = vpop.permute.xlu0 %242
    %246 = vset.pattern.permute.xlu0 0
    %247 = vperm.xlu0 %246, %v237
    %v248 = vpop.permute.xlu0 %247
    %251 = vset.pattern.permute.xlu0 0
    %252 = vperm.xlu0 %251, %v238
    %v253 = vpop.permute.xlu0 %252
    %256 = vset.pattern.permute.xlu0 0
    %257 = vperm.xlu0 %256, %v239
    %v258 = vpop.permute.xlu0 %257
    %v260 = vmul.f32 %v243, %v204
    %v261 = vmul.f32 %v243, %v205
    %v262 = vmul.f32 %v243, %v206
    %v263 = vmul.f32 %v243, %v207
    %v264 = vmul.f32 %v243, %v208
    %v265 = vmul.f32 %v243, %v209
    %v266 = vmul.f32 %v243, %v210
    %v267 = vmul.f32 %v243, %v211
    %v268 = vmul.f32 %v248, %v212
    %v269 = vmul.f32 %v248, %v213
    %v270 = vmul.f32 %v248, %v214
    %v271 = vmul.f32 %v248, %v215
    %v272 = vmul.f32 %v248, %v216
    %v273 = vmul.f32 %v248, %v217
    %v274 = vmul.f32 %v248, %v218
    %v275 = vmul.f32 %v248, %v219
    %v276 = vmul.f32 %v253, %v220
    %v277 = vmul.f32 %v253, %v221
    %v278 = vmul.f32 %v253, %v222
    %v279 = vmul.f32 %v253, %v223
    %v280 = vmul.f32 %v253, %v224
    %v281 = vmul.f32 %v253, %v225
    %v282 = vmul.f32 %v253, %v226
    %v283 = vmul.f32 %v253, %v227
    %v284 = vmul.f32 %v258, %v228
    %v285 = vmul.f32 %v258, %v229
    %v286 = vmul.f32 %v258, %v230
    %v287 = vmul.f32 %v258, %v231
    %v288 = vmul.f32 %v258, %v232
    %v289 = vmul.f32 %v258, %v233
    %v290 = vmul.f32 %v258, %v234
    %v291 = vmul.f32 %v258, %v235
    %v292 = vadd.f32 %v260, %v268
    %v293 = vadd.f32 %v292, %v276
    %v294 = vadd.f32 %v293, %v284
    %v295 = vrot.slane %v294, 4
    %v296 = vadd.f32 %v294, %v295
    %v297 = vrot.slane %v296, 2
    %v298 = vadd.f32 %v296, %v297
    %v299 = vrot.slane %v298, 1
    %v300 = vadd.f32 %v298, %v299
    %v301 = vadd.f32 %v261, %v269
    %v302 = vadd.f32 %v301, %v277
    %v303 = vadd.f32 %v302, %v285
    %v304 = vrot.slane %v303, 4
    %v305 = vadd.f32 %v303, %v304
    %v306 = vrot.slane %v305, 2
    %v307 = vadd.f32 %v305, %v306
    %v308 = vrot.slane %v307, 1
    %v309 = vadd.f32 %v307, %v308
    %v310 = vadd.f32 %v262, %v270
    %v311 = vadd.f32 %v310, %v278
    %v312 = vadd.f32 %v311, %v286
    %v313 = vrot.slane %v312, 4
    %v314 = vadd.f32 %v312, %v313
    %v315 = vrot.slane %v314, 2
    %v316 = vadd.f32 %v314, %v315
    %v317 = vrot.slane %v316, 1
    %v318 = vadd.f32 %v316, %v317
    %v319 = vadd.f32 %v263, %v271
    %v320 = vadd.f32 %v319, %v279
    %v321 = vadd.f32 %v320, %v287
    %v322 = vrot.slane %v321, 4
    %v323 = vadd.f32 %v321, %v322
    %v324 = vrot.slane %v323, 2
    %v325 = vadd.f32 %v323, %v324
    %v326 = vrot.slane %v325, 1
    %v327 = vadd.f32 %v325, %v326
    %v328 = vadd.f32 %v264, %v272
    %v329 = vadd.f32 %v328, %v280
    %v330 = vadd.f32 %v329, %v288
    %v331 = vrot.slane %v330, 4
    %v332 = vadd.f32 %v330, %v331
    %v333 = vrot.slane %v332, 2
    %v334 = vadd.f32 %v332, %v333
    %v335 = vrot.slane %v334, 1
    %v336 = vadd.f32 %v334, %v335
    %v337 = vadd.f32 %v265, %v273
    %v338 = vadd.f32 %v337, %v281
    %v339 = vadd.f32 %v338, %v289
    %v340 = vrot.slane %v339, 4
    %v341 = vadd.f32 %v339, %v340
    %v342 = vrot.slane %v341, 2
    %v343 = vadd.f32 %v341, %v342
    %v344 = vrot.slane %v343, 1
    %v345 = vadd.f32 %v343, %v344
    %v346 = vadd.f32 %v266, %v274
    %v347 = vadd.f32 %v346, %v282
    %v348 = vadd.f32 %v347, %v290
    %v349 = vrot.slane %v348, 4
    %v350 = vadd.f32 %v348, %v349
    %v351 = vrot.slane %v350, 2
    %v352 = vadd.f32 %v350, %v351
    %v353 = vrot.slane %v352, 1
    %v354 = vadd.f32 %v352, %v353
    %v355 = vadd.f32 %v267, %v275
    %v356 = vadd.f32 %v355, %v283
    %v357 = vadd.f32 %v356, %v291
    %v358 = vrot.slane %v357, 4
    %v359 = vadd.f32 %v357, %v358
    %v360 = vrot.slane %v359, 2
    %v361 = vadd.f32 %v359, %v360
    %v362 = vrot.slane %v361, 1
    %v363 = vadd.f32 %v361, %v362
    %v372 = vcombine.low %v300, %v309
    %v373 = vcombine.low %v318, %v327
    %v374 = vcombine.low %v336, %v345
    %v375 = vcombine.low %v354, %v363
    %v377 = vunpack.c.l.s4 1966171168
    %v378 = vunpack.c.0.s8 %v377
    %v379 = vlaneseq
    %v380 = vshrl.u32 %v379, 7
    %v381 = vsub.s32 %v378, %v380
    %v382 = vrot.slane %v372, %v381
    %v384 = vunpack.c.l.s4 1966171168
    %v385 = vunpack.c.0.s8 %v384
    %v386 = vlaneseq
    %v387 = vshrl.u32 %v386, 7
    %v388 = vsub.s32 %v385, %v387
    %v389 = vrot.slane %v373, %v388
    %v391 = vunpack.c.l.s4 1966171168
    %v392 = vunpack.c.0.s8 %v391
    %v393 = vlaneseq
    %v394 = vshrl.u32 %v393, 7
    %v395 = vsub.s32 %v392, %v394
    %v396 = vrot.slane %v374, %v395
    %v398 = vunpack.c.l.s4 1966171168
    %v399 = vunpack.c.0.s8 %v398
    %v400 = vlaneseq
    %v401 = vshrl.u32 %v400, 7
    %v402 = vsub.s32 %v399, %v401
    %v403 = vrot.slane %v375, %v402
    %v404 = vcombine.low %v382, %v389
    %v405 = vcombine.low %v396, %v403
    %v407 = vunpack.c.l.s4 1966171168
    %v408 = vunpack.c.0.s8 %v407
    %v409 = vlaneseq
    %v410 = vshrl.u32 %v409, 7
    %v411 = vsub.s32 %v408, %v410
    %v412 = vrot.slane %v404, %v411
    %v414 = vunpack.c.l.s4 1966171168
    %v415 = vunpack.c.0.s8 %v414
    %v416 = vlaneseq
    %v417 = vshrl.u32 %v416, 7
    %v418 = vsub.s32 %v415, %v417
    %v419 = vrot.slane %v405, %v418
    %v420 = vcombine.low %v412, %v419
    %422 = vst [vmem:[#allocation2] sm:$0xff] %v420
    // Predicated region
    $region18: #{tpu_custom_call.1} parent=1 // pred_check
      _
    $region19: #{tpu_custom_call.1} parent=1 // pred_check_branch
      %424 = sbr.rel (0) target = $region21
    $region20: #{tpu_custom_call.1} parent=1 // pred_region
      %s426 = ssub.s32 128, 128
      %427 = vsyncadd [#allocation3], %s426
      %s429 = sshll.u32 [#allocation2], 4
      %s430 = int_to_ptr.vmem [resolvable:$true] %s429
      %432 = dma.vmem_to_hbm [thread:$0]  %s430, 128, %s4, [#allocation3]
    $region21: #{tpu_custom_call.1} parent=1 // pred_fallthru
      _
    // Predicated region
    $region22: #{tpu_custom_call.1} parent=1 // pred_check
      _
    $region23: #{tpu_custom_call.1} parent=1 // pred_check_branch
      %434 = sbr.rel (0) target = $region25
    $region24: #{tpu_custom_call.1} parent=1 // pred_region
      %435 = dma.done [#allocation3], 128
    $region25: #{tpu_custom_call.1} parent=1 // pred_fallthru
      _
    %436 = vsyncpa [#allocation3], 1

</llo_original>
